<compile_context>
chip_gen: v5e
topology: v5e:2x2
jax: 0.10.0
libtpu: 0.0.40
codegen_flags: <defaults>
</compile_context>

<pallas_src>
import functools

import jax
import jax.numpy as jnp
import numpy as np
from jax.experimental import pallas as pl
from jax.experimental.pallas import tpu as pltpu


def _round_up(v: int, m: int) -> int:
    return ((v + m - 1) // m) * m


def _cdiv(a: int, b: int) -> int:
    return (a + b - 1) // b


def _spatial_attn_kernel(x_ref, wa_ref, wb_ref, bs_ref, vs_ref, o_ref, *, n_valid):
    # Block shapes per grid step:
    #   x_ref : (bb, Nc, CT)   matmul dtype (bf16 or f32), rows >= N zero padded
    #   wa_ref: (CT, T)        folded W_1*W_2, matmul dtype
    #   wb_ref: (CT, T)        folded W_3 (block-diagonal), matmul dtype
    #   bs_ref: (Ns, Nc)       f32
    #   vs_ref: (Ns, Ns)       matmul dtype (rows = output rows, cols = contraction)
    #   o_ref : (bb, Ns, Nc)   out dtype (bf16 by default)
    bb, nc, _ = x_ref.shape
    ns = vs_ref.shape[0]
    mm_dtype = vs_ref.dtype

    wa = wa_ref[...]
    wb = wb_ref[...]
    bs = bs_ref[...]
    vs = vs_ref[...]

    need_row_mask = ns > n_valid
    if need_row_mask:
        row = jax.lax.broadcasted_iota(jnp.int32, (ns, nc), 0)
        row_ok = row < n_valid

    def body(b, carry):
        xb = x_ref[b]                                               # (Nc, CT)
        # Two small MXU matmuls replace both x-contractions (no lane slicing).
        lhs_f = jnp.dot(xb, wa, preferred_element_type=jnp.float32)  # (Nc, T)
        xw3_f = jnp.dot(xb, wb, preferred_element_type=jnp.float32)  # (Nc, T)
        lhs = lhs_f[:ns, :].astype(mm_dtype)    # rows = contraction axis of V_s matmul
        xw3 = xw3_f.astype(mm_dtype)            # rows = output-column (lane) axis

        # product[n, m] = sum_t lhs[n, t] * xw3[m, t]   -> (Ns, Nc), f32 accumulation
        product = jax.lax.dot_general(
            lhs, xw3, (((1,), (1,)), ((), ())),
            preferred_element_type=jnp.float32)

        z = product + bs
        # sigmoid via tanh: one EUP transcendental instead of exp+divide.
        sig = 0.5 * (jnp.tanh(0.5 * z) + 1.0)

        # S = V_s @ sigmoid(...)  -> (Ns, Nc), f32 accumulation
        s = jnp.dot(vs, sig.astype(mm_dtype), preferred_element_type=jnp.float32)

        # Softmax over dim 1 of (B, N, N) == axis 0 of the per-batch matrix.
        if need_row_mask:
            s = jnp.where(row_ok, s, jnp.float32(-1e30))
        s = s - jnp.max(s, axis=0, keepdims=True)
        e = jnp.exp(s)
        denom = jnp.sum(e, axis=0, keepdims=True)
        o_ref[b] = (e * pl.reciprocal(denom, approx=True)).astype(o_ref.dtype)
        return carry

    jax.lax.fori_loop(0, bb, body, 0)


@functools.partial(jax.jit, static_argnames=("matmul_dtype", "out_dtype"))
def spatial_attention(x, W_1, W_2, W_3, b_s, V_s,
                      matmul_dtype=jnp.bfloat16, out_dtype=None):
    if out_dtype is None:
        out_dtype = matmul_dtype
    B, N, C, T = x.shape
    CT = C * T
    f32 = jnp.float32

    # ---- fold W_1 / W_2 / W_3 into two (C*T, T) matrices -------------------
    #   lhs[n, t'] = sum_{c,t} x[n,c,t] * W_1[t] * W_2[c,t']
    #   xw3[n, t ] = sum_{c}   x[n,c,t] * W_3[c]
    W_1 = W_1.astype(f32)
    W_2 = W_2.astype(f32)
    W_3 = W_3.astype(f32)
    wa = (W_1[None, :, None] * W_2[:, None, :]).reshape(CT, T).astype(matmul_dtype)
    wb = (W_3[:, None, None] * jnp.eye(T, dtype=f32)[None]).reshape(CT, T).astype(matmul_dtype)

    # ---- asymmetric N padding: sublane axes -> 8, lane axis -> 128 ---------
    Ns = _round_up(N, 8)      # output rows (softmax axis) and V_s contraction axis
    Nc = _round_up(N, 128)    # output columns / xw3 rows (lane-dense stores)

    mm_item = jnp.dtype(matmul_dtype).itemsize
    out_item = jnp.dtype(out_dtype).itemsize

    # ---- honest VMEM accounting & block-size selection ---------------------
    # Streaming blocks are double-buffered by the Pallas pipeline.
    per_batch_block = 2 * (Nc * CT * mm_item) + 2 * (Ns * Nc * out_item)
    # Resident operands (count x2 conservatively for pipeline buffering).
    fixed = 2 * (2 * CT * T * mm_item + Ns * Nc * 4 + Ns * Ns * mm_item)
    # Live temporaries for ONE batch inside the fori_loop (mostly f32 (Ns,Nc) tiles).
    temps = 6 * Ns * Nc * 4 + 4 * Nc * T * 4

    vmem_cap = 64 << 20   # conservative default (v7x-sized) if the query fails
    try:
        vmem_cap = int(pltpu.get_tpu_info().vmem_capacity_bytes)
    except Exception:
        pass
    # ~48 MiB on 64 MiB (v7x-like) parts, up to 96 MiB on 128 MiB (v5e/v6e) parts.
    vmem_limit = min((vmem_cap * 3) // 4, 96 << 20)
    budget = vmem_limit - fixed - temps - (2 << 20)
    bb = max(1, min(B, budget // max(per_batch_block, 1)))

    # Small-VMEM parts (v7x) have two TensorCores sharing the parallel grid axis:
    # keep >= 2 grid steps and an even number of steps for load balance.
    multi_core = vmem_cap <= (64 << 20)
    if multi_core and B > 1:
        bb = min(bb, _cdiv(B, 2))
    n_blocks = _cdiv(B, bb)
    if multi_core and B > 1 and n_blocks % 2 == 1 and n_blocks > 1:
        bb = _cdiv(B, n_blocks + 1)
        n_blocks = _cdiv(B, bb)
        if n_blocks % 2 == 1:
            n_blocks += 1
    Bp = n_blocks * bb

    need = fixed + temps + bb * per_batch_block + (2 << 20)
    vmem_limit = int(min(max(vmem_limit, need), max(vmem_cap - (4 << 20), need)))

    # ---- pad operands -------------------------------------------------------
    x2 = x.reshape(B, N, CT).astype(matmul_dtype)
    x2 = jnp.pad(x2, ((0, Bp - B), (0, Nc - N), (0, 0)))
    bs = jnp.pad(b_s.reshape(N, N).astype(f32), ((0, Ns - N), (0, Nc - N)))
    vs = jnp.pad(V_s.astype(matmul_dtype), ((0, Ns - N), (0, Ns - N)))

    # ---- cost estimate (advisory) -------------------------------------------
    flops = 2 * Bp * (2 * Nc * CT * T + Ns * Nc * T + Ns * Ns * Nc)
    transcendentals = 2 * Bp * Ns * Nc
    bytes_accessed = (Bp * Nc * CT * mm_item + Bp * Ns * Nc * out_item
                      + n_blocks * (2 * CT * T * mm_item + Ns * Nc * 4 + Ns * Ns * mm_item))
    cost = pl.CostEstimate(flops=int(flops), transcendentals=int(transcendentals),
                           bytes_accessed=int(bytes_accessed))

    kernel = functools.partial(_spatial_attn_kernel, n_valid=N)
    out = pl.pallas_call(
        kernel,
        out_shape=jax.ShapeDtypeStruct((Bp, Ns, Nc), out_dtype),
        grid_spec=pltpu.PrefetchScalarGridSpec(
            num_scalar_prefetch=0,
            grid=(n_blocks,),
            in_specs=[
                pl.BlockSpec((bb, Nc, CT), lambda i: (i, 0, 0)),
                pl.BlockSpec((CT, T), lambda i: (0, 0)),
                pl.BlockSpec((CT, T), lambda i: (0, 0)),
                pl.BlockSpec((Ns, Nc), lambda i: (0, 0)),
                pl.BlockSpec((Ns, Ns), lambda i: (0, 0)),
            ],
            out_specs=pl.BlockSpec((bb, Ns, Nc), lambda i: (i, 0, 0)),
        ),
        compiler_params=pltpu.CompilerParams(
            dimension_semantics=("parallel",),
            vmem_limit_bytes=int(vmem_limit),
        ),
        cost_estimate=cost,
    )(x2, wa, wb, bs, vs)
    return out[:B, :N, :N]


def _reference_naive(x, W_1, W_2, W_3, b_s, V_s):
    # Pure-JAX reference of the documented (batched) forward pass, all f32.
    lhs = jnp.einsum("bnct,t->bnc", x, W_1)
    lhs = jnp.einsum("bnc,ct->bnt", lhs, W_2)
    rhs = jnp.einsum("bnct,c->btn", x, W_3)
    product = jnp.einsum("bnt,btm->bnm", lhs, rhs)
    S = jnp.einsum("nm,bmk->bnk", V_s, jax.nn.sigmoid(product + b_s))
    S = S - jnp.max(S, axis=1, keepdims=True)
    e = jnp.exp(S)
    return e / jnp.sum(e, axis=1, keepdims=True)


def _reference_fused(x, W_1, W_2, W_3, b_s, V_s, matmul_dtype, out_dtype):
    # Emulates the kernel's folded-weight / mixed-precision math (for bf16 check).
    B, N, C, T = x.shape
    f32 = jnp.float32
    wa = (W_1.astype(f32)[None, :, None] * W_2.astype(f32)[:, None, :]).reshape(C * T, T)
    wb = (W_3.astype(f32)[:, None, None] * jnp.eye(T, dtype=f32)[None]).reshape(C * T, T)
    wa = wa.astype(matmul_dtype)
    wb = wb.astype(matmul_dtype)
    x2 = x.reshape(B, N, C * T).astype(matmul_dtype)
    lhs = jnp.einsum("bnk,kt->bnt", x2, wa, preferred_element_type=f32).astype(matmul_dtype)
    xw3 = jnp.einsum("bnk,kt->bnt", x2, wb, preferred_element_type=f32).astype(matmul_dtype)
    product = jnp.einsum("bnt,bmt->bnm", lhs, xw3, preferred_element_type=f32)
    z = product + b_s.reshape(1, N, N).astype(f32)
    sig = 0.5 * (jnp.tanh(0.5 * z) + 1.0)
    S = jnp.einsum("nm,bmk->bnk", V_s.astype(matmul_dtype), sig.astype(matmul_dtype),
                   preferred_element_type=f32)
    S = S - jnp.max(S, axis=1, keepdims=True)
    e = jnp.exp(S)
    out = e / jnp.sum(e, axis=1, keepdims=True)
    return out.astype(out_dtype)


if __name__ == "__main__":
    # Small shapes consistent with the module.
    B, N, C, T = 2, 16, 4, 8  # batch, num_of_vertices, num_of_features, num_of_timesteps

    key = jax.random.PRNGKey(0)
    kx, k1, k2, k3, kb, kv = jax.random.split(key, 6)

    x = jax.random.normal(kx, (B, N, C, T), dtype=jnp.float32)
    W_1 = jax.random.normal(k1, (T,), dtype=jnp.float32)
    W_2 = jax.random.normal(k2, (C, T), dtype=jnp.float32)
    W_3 = jax.random.normal(k3, (C,), dtype=jnp.float32)
    b_s = jax.random.normal(kb, (1, N, N), dtype=jnp.float32)
    V_s = jax.random.normal(kv, (N, N), dtype=jnp.float32)

    # f32 matmul / f32 output path: check against the exact (PyTorch-order) reference.
    out_f32 = jax.block_until_ready(
        spatial_attention(x, W_1, W_2, W_3, b_s, V_s,
                          matmul_dtype=jnp.float32, out_dtype=jnp.float32))
    ref = jax.block_until_ready(_reference_naive(x, W_1, W_2, W_3, b_s, V_s))
    np.testing.assert_allclose(np.asarray(out_f32), np.asarray(ref), rtol=5e-3, atol=5e-3)
    assert out_f32.shape == (B, N, N)

    # bf16 matmul / bf16 output path (default, production config): check against a
    # reference that emulates the same folded-weight / mixed-precision math.
    out_bf16 = jax.block_until_ready(
        spatial_attention(x, W_1, W_2, W_3, b_s, V_s))
    assert out_bf16.dtype == jnp.bfloat16 and out_bf16.shape == (B, N, N)
    ref_bf16 = jax.block_until_ready(
        _reference_fused(x, W_1, W_2, W_3, b_s, V_s, jnp.bfloat16, jnp.float32))
    np.testing.assert_allclose(np.asarray(out_bf16.astype(jnp.float32)),
                               np.asarray(ref_bf16), rtol=2e-2, atol=8e-3)

    print("KERNEL_OK")
</pallas_src>

<mosaic_0001>
module attributes {stable_mosaic.version = 11 : i64} {
  func.func @_spatial_attn_kernel(%arg0: i32, %arg1: memref<1x128x32xf32, #tpu.memory_space<vmem>>, %arg2: memref<32x8xf32, #tpu.memory_space<vmem>>, %arg3: memref<32x8xf32, #tpu.memory_space<vmem>>, %arg4: memref<16x128xf32, #tpu.memory_space<vmem>>, %arg5: memref<16x16xf32, #tpu.memory_space<vmem>>, %arg6: memref<1x16x128xf32, #tpu.memory_space<vmem>>) attributes {dimension_semantics = [#tpu.dimension_semantics<parallel>], iteration_bounds = array<i64: 2>, scalar_prefetch = 0 : i64, scratch_operands = 0 : i64, tpu.core_type = #tpu.core_type<tc>, window_params = [{transform_indices = @transform_0, window_bounds = array<i64: 1, 128, 32>}, {pipeline_mode = #tpu.pipeline_mode<synchronous>, transform_indices = @transform_1, window_bounds = array<i64: 32, 8>}, {pipeline_mode = #tpu.pipeline_mode<synchronous>, transform_indices = @transform_2, window_bounds = array<i64: 32, 8>}, {pipeline_mode = #tpu.pipeline_mode<synchronous>, transform_indices = @transform_3, window_bounds = array<i64: 16, 128>}, {pipeline_mode = #tpu.pipeline_mode<synchronous>, transform_indices = @transform_4, window_bounds = array<i64: 16, 16>}, {transform_indices = @transform_5, window_bounds = array<i64: 1, 16, 128>}]} {
    %c0 = arith.constant 0 : index
    %c0_0 = arith.constant 0 : index
    %0 = vector.load %arg2[%c0, %c0_0] : memref<32x8xf32, #tpu.memory_space<vmem>>, vector<32x8xf32>
    %c0_1 = arith.constant 0 : index
    %c0_2 = arith.constant 0 : index
    %1 = vector.load %arg3[%c0_1, %c0_2] : memref<32x8xf32, #tpu.memory_space<vmem>>, vector<32x8xf32>
    %c0_3 = arith.constant 0 : index
    %c0_4 = arith.constant 0 : index
    %2 = vector.load %arg4[%c0_3, %c0_4] : memref<16x128xf32, #tpu.memory_space<vmem>>, vector<16x128xf32>
    %c0_5 = arith.constant 0 : index
    %c0_6 = arith.constant 0 : index
    %3 = vector.load %arg5[%c0_5, %c0_6] : memref<16x16xf32, #tpu.memory_space<vmem>>, vector<16x16xf32>
    %c0_i32 = arith.constant 0 : i32
    %4 = arith.index_cast %c0_i32 : i32 to index
    %c0_7 = arith.constant 0 : index
    %c0_8 = arith.constant 0 : index
    %5 = vector.load %arg1[%4, %c0_7, %c0_8] : memref<1x128x32xf32, #tpu.memory_space<vmem>>, vector<1x128x32xf32>
    %6 = vector.shape_cast %5 : vector<1x128x32xf32> to vector<128x32xf32>
    %cst = arith.constant dense<0.000000e+00> : vector<128x8xf32>
    %7 = tpu.matmul %6, %0, %cst {dimension_numbers = #tpu.dot_dimension_numbers<[1], [0], [0], [1], [0, 0, 1, 1], [], []>} : vector<128x32xf32>, vector<32x8xf32>, vector<128x8xf32> -> vector<128x8xf32>
    %cst_9 = arith.constant dense<0.000000e+00> : vector<128x8xf32>
    %8 = tpu.matmul %6, %1, %cst_9 {dimension_numbers = #tpu.dot_dimension_numbers<[1], [0], [0], [1], [0, 0, 1, 1], [], []>} : vector<128x32xf32>, vector<32x8xf32>, vector<128x8xf32> -> vector<128x8xf32>
    %9 = vector.extract_strided_slice %7 {offsets = [0, 0], sizes = [16, 8], strides = [1, 1]} : vector<128x8xf32> to vector<16x8xf32>
    %cst_10 = arith.constant dense<0.000000e+00> : vector<16x128xf32>
    %10 = tpu.matmul %9, %8, %cst_10 {dimension_numbers = #tpu.dot_dimension_numbers<[1], [1], [0], [0], [0, 0, 1, 0], [], []>} : vector<16x8xf32>, vector<128x8xf32>, vector<16x128xf32> -> vector<16x128xf32>
    %11 = arith.addf %10, %2 : vector<16x128xf32>
    %cst_11 = arith.constant 5.000000e-01 : f32
    %12 = vector.broadcast %cst_11 : f32 to vector<16x128xf32>
    %13 = arith.mulf %12, %11 : vector<16x128xf32>
    %14 = math.tanh %13 : vector<16x128xf32>
    %cst_12 = arith.constant 1.000000e+00 : f32
    %15 = vector.broadcast %cst_12 : f32 to vector<16x128xf32>
    %16 = arith.addf %14, %15 : vector<16x128xf32>
    %cst_13 = arith.constant 5.000000e-01 : f32
    %17 = vector.broadcast %cst_13 : f32 to vector<16x128xf32>
    %18 = arith.mulf %17, %16 : vector<16x128xf32>
    %cst_14 = arith.constant dense<0.000000e+00> : vector<16x128xf32>
    %19 = tpu.matmul %3, %18, %cst_14 {dimension_numbers = #tpu.dot_dimension_numbers<[1], [0], [0], [1], [0, 0, 1, 1], [], []>} : vector<16x16xf32>, vector<16x128xf32>, vector<16x128xf32> -> vector<16x128xf32>
    %cst_15 = arith.constant dense<0xFF800000> : vector<128xf32>
    %20 = vector.multi_reduction <maximumf>, %19, %cst_15 [0] : vector<16x128xf32> to vector<128xf32>
    %21 = vector.shape_cast %20 : vector<128xf32> to vector<1x128xf32>
    %22 = vector.broadcast %21 : vector<1x128xf32> to vector<16x128xf32>
    %23 = arith.subf %19, %22 : vector<16x128xf32>
    %24 = math.exp %23 : vector<16x128xf32>
    %cst_16 = arith.constant dense<0.000000e+00> : vector<128xf32>
    %25 = vector.multi_reduction <add>, %24, %cst_16 [0] : vector<16x128xf32> to vector<128xf32>
    %26 = vector.shape_cast %25 : vector<128xf32> to vector<1x128xf32>
    %27 = tpu.reciprocal %26 {approx = true} : vector<1x128xf32> -> vector<1x128xf32>
    %28 = vector.broadcast %27 : vector<1x128xf32> to vector<16x128xf32>
    %29 = arith.mulf %24, %28 : vector<16x128xf32>
    %30 = arith.index_cast %c0_i32 : i32 to index
    %c0_17 = arith.constant 0 : index
    %c0_18 = arith.constant 0 : index
    %31 = vector.load %arg6[%30, %c0_17, %c0_18] : memref<1x16x128xf32, #tpu.memory_space<vmem>>, vector<1x16x128xf32>
    %32 = vector.shape_cast %31 : vector<1x16x128xf32> to vector<16x128xf32>
    %33 = vector.shape_cast %29 : vector<16x128xf32> to vector<1x16x128xf32>
    tpu.vector_store %arg6[%30, %c0_17, %c0_18], %33 {strides = array<i32>} : memref<1x16x128xf32, #tpu.memory_space<vmem>>, vector<1x16x128xf32>,
    %c1_i32 = arith.constant 1 : i32
    return
  }
  func.func @transform_0(%arg0: i32) -> (i32, i32, i32) {
    %c0_i32 = arith.constant 0 : i32
    %c0_i32_0 = arith.constant 0 : i32
    %c0_i32_1 = arith.constant 0 : i32
    return %arg0, %c0_i32, %c0_i32_0 : i32, i32, i32
  }
  func.func @transform_1(%arg0: i32) -> (i32, i32) {
    %c0_i32 = arith.constant 0 : i32
    %c0_i32_0 = arith.constant 0 : i32
    %c0_i32_1 = arith.constant 0 : i32
    return %c0_i32, %c0_i32_0 : i32, i32
  }
  func.func @transform_2(%arg0: i32) -> (i32, i32) {
    %c0_i32 = arith.constant 0 : i32
    %c0_i32_0 = arith.constant 0 : i32
    %c0_i32_1 = arith.constant 0 : i32
    return %c0_i32, %c0_i32_0 : i32, i32
  }
  func.func @transform_3(%arg0: i32) -> (i32, i32) {
    %c0_i32 = arith.constant 0 : i32
    %c0_i32_0 = arith.constant 0 : i32
    %c0_i32_1 = arith.constant 0 : i32
    return %c0_i32, %c0_i32_0 : i32, i32
  }
  func.func @transform_4(%arg0: i32) -> (i32, i32) {
    %c0_i32 = arith.constant 0 : i32
    %c0_i32_0 = arith.constant 0 : i32
    %c0_i32_1 = arith.constant 0 : i32
    return %c0_i32, %c0_i32_0 : i32, i32
  }
  func.func @transform_5(%arg0: i32) -> (i32, i32, i32) {
    %c0_i32 = arith.constant 0 : i32
    %c0_i32_0 = arith.constant 0 : i32
    %c0_i32_1 = arith.constant 0 : i32
    return %arg0, %c0_i32, %c0_i32_0 : i32, i32, i32
  }
}

</mosaic_0001>

<llo_original>
// kernel: spatial_attention.1
$region0: #{spatial_attention.1}
  #allocation0 [shape = 'u32[]', space=smem, size = 0x4, offset = 0x4, fixed_abs, tag = 'smem constant byte address 0x4 - core index']
  #allocation1 [shape = 'u32[72,128]{1,0:T(1,128)}', space=vmem, size = 0x9000, scoped, tag = 'internal scratch']
  %s0 = inlined_call_operand.vmem [shape: f32[2,128,32], index: 0, kind: input, shape index: {}]
  %s1 = inlined_call_operand.vmem [shape: f32[32,8], index: 1, kind: input, shape index: {}]
  %s2 = inlined_call_operand.vmem [shape: f32[32,8], index: 2, kind: input, shape index: {}]
  %s3 = inlined_call_operand.vmem [shape: f32[16,128], index: 3, kind: input, shape index: {}]
  %s4 = inlined_call_operand.vmem [shape: f32[16,16], index: 4, kind: input, shape index: {}]
  %s5 = inlined_call_operand.hbm [shape: f32[2,16,128], index: 5, kind: output, shape index: {}]
  %s6 = sld [smem:[#allocation0]]
  $region53: #{spatial_attention.1} parent=0
    _
  %s8 = ssub.s32 1, %s6
  %s9 = scalar_select 0, %s8, %s6
  $region1: #{spatial_attention.1} parent=0
    #allocation2 [shape = 'u8[16384]{0}', space=vmem, size = 0x4000, scoped, tag = 'output window, operand 0']
    #allocation3 [shape = 's32[2]{0}', space=sflag, size = 0x8, scoped, tag = 'scoped memory for spatial_attention.1']
    %10 = vsyncpa [#allocation3], 0
    %s11 = scalar_lea.sflag [#allocation3], 1
    %12 = vsyncpa %s11, 0
    loop: start=0, step=1, limit=4
    $region2: #{spatial_attention.1} parent=1 // loop_pre_header
      _
    $region3: #{spatial_attention.1} parent=1 // loop_header
      %s14 = sphi 0, %s18
      %p15 = scmp.ge.s32.totalorder %s14, 4
      %s24 = sphi 0, %s26
      %s27 = sphi 0, %s24
      %s28 = sphi 0, %s27
      %s44 = sphi 0, %s28
      %s48 = sphi 0, %s48
      %s50 = sphi 0, %s48
      %s51 = sphi 0, %s50
      %s65 = sphi 0, %s51
      %s69 = sphi 0, %s69
      %s71 = sphi 0, %s69
      %s72 = sphi 0, %s71
      %s86 = sphi 0, %s72
      %s90 = sphi 0, %s90
      %s92 = sphi 0, %s90
      %s93 = sphi 0, %s92
      %s107 = sphi 0, %s93
      %s111 = sphi 0, %s111
      %s113 = sphi 0, %s111
      %s114 = sphi 0, %s113
      %s128 = sphi 0, %s114
      %s134 = sphi 0, %s136
      %s137 = sphi 0, %s134
      %s138 = sphi 0, %s137
      %s154 = sphi 0, %s138
    $region4: #{spatial_attention.1} parent=1 // loop_header_branch
      %17 = sbr.rel (%p15) target = $region8
    $region5: #{spatial_attention.1} parent=1 // loop_body
      %s19 = ssub.s32 %s14, 1
      %s20 = ssub.s32 %s14, 2
      %s21 = sadd.s32 %s14, 1
      %s22 = ssub.s32 %s14, %s21
      %p23 = scmp.eq.s32.totalorder %s22, 0
      %s25 = sadd.s32 %s24, 1
      %s26 = scalar_select %p23, %s24, %s25
      %p29 = pneg %p23
      %p30 = scmp.eq.s32.totalorder %s14, 1
      %p31 = por %p29, %p30
      %p32 = scmp.ne.s32.totalorder %s24, %s27
      %p33 = scmp.eq.s32.totalorder %s14, 0
      %p34 = por %p32, %p33
      %p35 = scmp.ne.s32.totalorder %s24, %s27
      %p36 = scmp.eq.s32.totalorder %s19, 1
      %p37 = por %p35, %p36
      %p38 = scmp.ne.s32.totalorder %s27, %s28
      %p39 = scmp.eq.s32.totalorder %s19, 0
      %p40 = por %p38, %p39
      %p41 = scmp.ne.s32.totalorder %s27, %s28
      %p42 = scmp.eq.s32.totalorder %s20, 1
      %p43 = por %p41, %p42
      %p45 = scmp.ne.s32.totalorder %s28, %s44
      %p46 = scmp.eq.s32.totalorder %s20, 0
      %p47 = por %p45, %p46
      %s49 = sadd.s32 %s48, 1
      %p52 = scmp.eq.s32.totalorder %s14, 1
      %p53 = scmp.ne.s32.totalorder %s48, %s50
      %p54 = scmp.eq.s32.totalorder %s14, 0
      %p55 = por %p53, %p54
      %p56 = scmp.ne.s32.totalorder %s48, %s50
      %p57 = scmp.eq.s32.totalorder %s19, 1
      %p58 = por %p56, %p57
      %p59 = scmp.ne.s32.totalorder %s50, %s51
      %p60 = scmp.eq.s32.totalorder %s19, 0
      %p61 = por %p59, %p60
      %p62 = scmp.ne.s32.totalorder %s50, %s51
      %p63 = scmp.eq.s32.totalorder %s20, 1
      %p64 = por %p62, %p63
      %p66 = scmp.ne.s32.totalorder %s51, %s65
      %p67 = scmp.eq.s32.totalorder %s20, 0
      %p68 = por %p66, %p67
      %s70 = sadd.s32 %s69, 1
      %p73 = scmp.eq.s32.totalorder %s14, 1
      %p74 = scmp.ne.s32.totalorder %s69, %s71
      %p75 = scmp.eq.s32.totalorder %s14, 0
      %p76 = por %p74, %p75
      %p77 = scmp.ne.s32.totalorder %s69, %s71
      %p78 = scmp.eq.s32.totalorder %s19, 1
      %p79 = por %p77, %p78
      %p80 = scmp.ne.s32.totalorder %s71, %s72
      %p81 = scmp.eq.s32.totalorder %s19, 0
      %p82 = por %p80, %p81
      %p83 = scmp.ne.s32.totalorder %s71, %s72
      %p84 = scmp.eq.s32.totalorder %s20, 1
      %p85 = por %p83, %p84
      %p87 = scmp.ne.s32.totalorder %s72, %s86
      %p88 = scmp.eq.s32.totalorder %s20, 0
      %p89 = por %p87, %p88
      %s91 = sadd.s32 %s90, 1
      %p94 = scmp.eq.s32.totalorder %s14, 1
      %p95 = scmp.ne.s32.totalorder %s90, %s92
      %p96 = scmp.eq.s32.totalorder %s14, 0
      %p97 = por %p95, %p96
      %p98 = scmp.ne.s32.totalorder %s90, %s92
      %p99 = scmp.eq.s32.totalorder %s19, 1
      %p100 = por %p98, %p99
      %p101 = scmp.ne.s32.totalorder %s92, %s93
      %p102 = scmp.eq.s32.totalorder %s19, 0
      %p103 = por %p101, %p102
      %p104 = scmp.ne.s32.totalorder %s92, %s93
      %p105 = scmp.eq.s32.totalorder %s20, 1
      %p106 = por %p104, %p105
      %p108 = scmp.ne.s32.totalorder %s93, %s107
      %p109 = scmp.eq.s32.totalorder %s20, 0
      %p110 = por %p108, %p109
      %s112 = sadd.s32 %s111, 1
      %p115 = scmp.eq.s32.totalorder %s14, 1
      %p116 = scmp.ne.s32.totalorder %s111, %s113
      %p117 = scmp.eq.s32.totalorder %s14, 0
      %p118 = por %p116, %p117
      %p119 = scmp.ne.s32.totalorder %s111, %s113
      %p120 = scmp.eq.s32.totalorder %s19, 1
      %p121 = por %p119, %p120
      %p122 = scmp.ne.s32.totalorder %s113, %s114
      %p123 = scmp.eq.s32.totalorder %s19, 0
      %p124 = por %p122, %p123
      %p125 = scmp.ne.s32.totalorder %s113, %s114
      %p126 = scmp.eq.s32.totalorder %s20, 1
      %p127 = por %p125, %p126
      %p129 = scmp.ne.s32.totalorder %s114, %s128
      %p130 = scmp.eq.s32.totalorder %s20, 0
      %p131 = por %p129, %p130
      %s132 = ssub.s32 %s14, %s21
      %p133 = scmp.eq.s32.totalorder %s132, 0
      %s135 = sadd.s32 %s134, 1
      %s136 = scalar_select %p133, %s134, %s135
      %p139 = pneg %p133
      %p140 = scmp.eq.s32.totalorder %s14, 1
      %p141 = por %p139, %p140
      %p142 = scmp.ne.s32.totalorder %s134, %s137
      %p143 = scmp.eq.s32.totalorder %s14, 0
      %p144 = por %p142, %p143
      %p145 = scmp.ne.s32.totalorder %s134, %s137
      %p146 = scmp.eq.s32.totalorder %s19, 1
      %p147 = por %p145, %p146
      %p148 = scmp.ne.s32.totalorder %s137, %s138
      %p149 = scmp.eq.s32.totalorder %s19, 0
      %p150 = por %p148, %p149
      %p151 = scmp.ne.s32.totalorder %s137, %s138
      %p152 = scmp.eq.s32.totalorder %s20, 1
      %p153 = por %p151, %p152
      %p155 = scmp.ne.s32.totalorder %s138, %s154
      %p156 = scmp.eq.s32.totalorder %s20, 0
      %p157 = por %p155, %p156
      %p158 = scmp.le.s32.totalorder 1, %s14
      %p159 = scmp.lt.s32.totalorder %s14, 3
      %p160 = pnand %p158, %p159
      %p161 = pneg %p160
      // Predicated region
      $region9: #{spatial_attention.1} parent=5 // pred_check
        _
      $region10: #{spatial_attention.1} parent=5 // pred_check_branch
        %163 = sbr.rel (%p160) target = $region12
      $region11: #{spatial_attention.1} parent=5 // pred_region
        %s164 = ssub.s32 %s14, 1
        // Predicated region
        $region13: #{spatial_attention.1} parent=11 // pred_check
          %p165 = pneg %p61
        $region14: #{spatial_attention.1} parent=11 // pred_check_branch
          %167 = sbr.rel (%p165) target = $region16
        $region15: #{spatial_attention.1} parent=11 // pred_region
          _
        $region16: #{spatial_attention.1} parent=11 // pred_fallthru
          _
        // Predicated region
        $region17: #{spatial_attention.1} parent=11 // pred_check
          %p168 = pneg %p82
        $region18: #{spatial_attention.1} parent=11 // pred_check_branch
          %170 = sbr.rel (%p168) target = $region20
        $region19: #{spatial_attention.1} parent=11 // pred_region
          _
        $region20: #{spatial_attention.1} parent=11 // pred_fallthru
          _
        // Predicated region
        $region21: #{spatial_attention.1} parent=11 // pred_check
          %p171 = pneg %p103
        $region22: #{spatial_attention.1} parent=11 // pred_check_branch
          %173 = sbr.rel (%p171) target = $region24
        $region23: #{spatial_attention.1} parent=11 // pred_region
          _
        $region24: #{spatial_attention.1} parent=11 // pred_fallthru
          _
        // Predicated region
        $region25: #{spatial_attention.1} parent=11 // pred_check
          %p174 = pneg %p124
        $region26: #{spatial_attention.1} parent=11 // pred_check_branch
          %176 = sbr.rel (%p174) target = $region28
        $region27: #{spatial_attention.1} parent=11 // pred_region
          _
        $region28: #{spatial_attention.1} parent=11 // pred_fallthru
          _
      $region12: #{spatial_attention.1} parent=5 // pred_fallthru
        _
      %p177 = scmp.lt.s32.totalorder %s14, 2
      // Predicated region
      $region29: #{spatial_attention.1} parent=5 // pred_check
        %p178 = pneg %p177
      $region30: #{spatial_attention.1} parent=5 // pred_check_branch
        %180 = sbr.rel (%p178) target = $region32
      $region31: #{spatial_attention.1} parent=5 // pred_region
        // Predicated region
        $region33: #{spatial_attention.1} parent=31 // pred_check
          %p181 = pneg %p34
        $region34: #{spatial_attention.1} parent=31 // pred_check_branch
          %183 = sbr.rel (%p181) target = $region36
        $region35: #{spatial_attention.1} parent=31 // pred_region
          %p184 = scmp.lt.s32.totalorder %s14, 1
          %s185 = scalar_select %p184, %s14, 1
          %s186 = smul.addr %s185, 16
          %s187 = smul.addr %s186, 8
          %s188 = scalar_lea.vmem %s0, %s187
        $region36: #{spatial_attention.1} parent=31 // pred_fallthru
          _
      $region32: #{spatial_attention.1} parent=5 // pred_fallthru
        _
      %p189 = scmp.le.s32.totalorder 1, %s14
      %p190 = scmp.lt.s32.totalorder %s14, 3
      %p191 = pnand %p189, %p190
      %p192 = pneg %p191
      // Predicated region
      $region37: #{spatial_attention.1} parent=5 // pred_check
        _
      $region38: #{spatial_attention.1} parent=5 // pred_check_branch
        %194 = sbr.rel (%p191) target = $region40
      $region39: #{spatial_attention.1} parent=5 // pred_region
        %s195 = ssub.s32 %s14, 1
        %p196 = scmp.lt.s32.totalorder %s19, 1
        %s197 = scalar_select %p196, %s19, 1
        %s198 = smul.addr %s197, 16
        %s199 = smul.addr %s198, 8
        %s200 = scalar_lea.vmem %s0, %s199
        %p201 = pneg %p40
        %p202 = pneg %p37
        %p203 = pneg %p61
        %p204 = pneg %p58
        %p205 = pneg %p82
        %p206 = pneg %p79
        %p207 = pneg %p103
        %p208 = pneg %p100
        %p209 = pneg %p124
        %p210 = pneg %p121
        %p211 = pneg %p150
        %p212 = pneg %p147
        %s213 = sand.u32 %s137, 1
        %s214 = scalar_lea.sflag [#allocation3], %s213
        %s215 = sand.u32 %s137, 1
        %s216 = smul.addr %s215, 16
        %s217 = scalar_lea.vmem [#allocation2], %s216
        %p218 = scmp.lt.s32.totalorder %s19, 1
        %s219 = scalar_select %p218, %s19, 1
        %s220 = smul.addr %s219, 16
        %s221 = smul.addr %s220, 8
        %s222 = scalar_lea.vmem %s0, %s221
        %v223 = vld [vmem:[%s1] sm:$0xff]
        %v224 = vld [vmem:[%s1 + $0x8] sm:$0xff]
        %v225 = vld [vmem:[%s1 + $0x10] sm:$0xff]
        %v226 = vld [vmem:[%s1 + $0x18] sm:$0xff]
        %v227 = vld [vmem:[%s2] sm:$0xff]
        %v228 = vld [vmem:[%s2 + $0x8] sm:$0xff]
        %v229 = vld [vmem:[%s2 + $0x10] sm:$0xff]
        %v230 = vld [vmem:[%s2 + $0x18] sm:$0xff]
        %v231 = vld [vmem:[%s3] sm:$0xff]
        %v232 = vld [vmem:[%s3 + $0x8] sm:$0xff]
        %v233 = vld [vmem:[%s4] sm:$0xff]
        %v234 = vld [vmem:[%s4 + $0x8] sm:$0xff]
        %v235 = vld [vmem:[%s222] sm:$0xff]
        %v236 = vld [vmem:[%s222 + $0x8] sm:$0xff]
        %v237 = vld [vmem:[%s222 + $0x10] sm:$0xff]
        %v238 = vld [vmem:[%s222 + $0x18] sm:$0xff]
        %v239 = vld [vmem:[%s222 + $0x20] sm:$0xff]
        %v240 = vld [vmem:[%s222 + $0x28] sm:$0xff]
        %v241 = vld [vmem:[%s222 + $0x30] sm:$0xff]
        %v242 = vld [vmem:[%s222 + $0x38] sm:$0xff]
        %v243 = vld [vmem:[%s222 + $0x40] sm:$0xff]
        %v244 = vld [vmem:[%s222 + $0x48] sm:$0xff]
        %v245 = vld [vmem:[%s222 + $0x50] sm:$0xff]
        %v246 = vld [vmem:[%s222 + $0x58] sm:$0xff]
        %v247 = vld [vmem:[%s222 + $0x60] sm:$0xff]
        %v248 = vld [vmem:[%s222 + $0x68] sm:$0xff]
        %v249 = vld [vmem:[%s222 + $0x70] sm:$0xff]
        %v250 = vld [vmem:[%s222 + $0x78] sm:$0xff]
        %vm251 = vcmask 261120
        %v253 = vsel %vm251, %v235, 0
        %v256 = vsel %vm251, %v236, 0
        %v259 = vsel %vm251, %v237, 0
        %v262 = vsel %vm251, %v238, 0
        %v265 = vsel %vm251, %v239, 0
        %v268 = vsel %vm251, %v240, 0
        %v271 = vsel %vm251, %v241, 0
        %v274 = vsel %vm251, %v242, 0
        %v277 = vsel %vm251, %v243, 0
        %v280 = vsel %vm251, %v244, 0
        %v283 = vsel %vm251, %v245, 0
        %v286 = vsel %vm251, %v246, 0
        %v289 = vsel %vm251, %v247, 0
        %v292 = vsel %vm251, %v248, 0
        %v295 = vsel %vm251, %v249, 0
        %v298 = vsel %vm251, %v250, 0
        %300 = vmatpush.msra.mxu0 0.0
        %301 = vmatpush.msra.mxu0 0.0
        %302 = vmatpush.msra.mxu0 0.0
        %303 = vmatpush.msra.mxu0 0.0
        %304 = vmatpush.msra.mxu0 0.0
        %305 = vmatpush.msra.mxu0 0.0
        %306 = vmatpush.msra.mxu0 0.0
        %307 = vmatpush.msra.mxu0 0.0
        %308 = vmatpush.msra.mxu0 0.0
        %309 = vmatpush.msra.mxu0 0.0
        %310 = vmatpush.msra.mxu0 0.0
        %311 = vmatpush.msra.mxu0 0.0
        %312 = vmatpush.msra.mxu0 %v226
        %313 = vmatpush.msra.mxu0 %v225
        %314 = vmatpush.msra.mxu0 %v224
        %315 = vmatpush.msra.mxu0 %v223
        %316 = vmatmul.f32.gmra.mxu0 %v253
        %v317 = vpop.f32.mrf.mxu0
        %v318 = vadd.f32 0.0, %v317
        %319 = vmatmul.f32.gmra.mxu0 %v256
        %v320 = vpop.f32.mrf.mxu0
        %v321 = vadd.f32 0.0, %v320
        %322 = vmatmul.f32.gmra.mxu0 %v259
        %v323 = vpop.f32.mrf.mxu0
        %324 = vmatmul.f32.gmra.mxu0 %v262
        %v325 = vpop.f32.mrf.mxu0
        %326 = vmatmul.f32.gmra.mxu0 %v265
        %v327 = vpop.f32.mrf.mxu0
        %328 = vmatmul.f32.gmra.mxu0 %v268
        %v329 = vpop.f32.mrf.mxu0
        %330 = vmatmul.f32.gmra.mxu0 %v271
        %v331 = vpop.f32.mrf.mxu0
        %332 = vmatmul.f32.gmra.mxu0 %v274
        %v333 = vpop.f32.mrf.mxu0
        %334 = vmatmul.f32.gmra.mxu0 %v277
        %v335 = vpop.f32.mrf.mxu0
        %336 = vmatmul.f32.gmra.mxu0 %v280
        %v337 = vpop.f32.mrf.mxu0
        %338 = vmatmul.f32.gmra.mxu0 %v283
        %v339 = vpop.f32.mrf.mxu0
        %340 = vmatmul.f32.gmra.mxu0 %v286
        %v341 = vpop.f32.mrf.mxu0
        %342 = vmatmul.f32.gmra.mxu0 %v289
        %v343 = vpop.f32.mrf.mxu0
        %344 = vmatmul.f32.gmra.mxu0 %v292
        %v345 = vpop.f32.mrf.mxu0
        %346 = vmatmul.f32.gmra.mxu0 %v295
        %v347 = vpop.f32.mrf.mxu0
        %348 = vmatmul.f32.gmra.mxu0 %v298
        %v349 = vpop.f32.mrf.mxu0
        %350 = vdwg.mxu0
        %351 = vmatpush.msra.mxu0 0.0
        %352 = vmatpush.msra.mxu0 0.0
        %353 = vmatpush.msra.mxu0 0.0
        %354 = vmatpush.msra.mxu0 0.0
        %355 = vmatpush.msra.mxu0 0.0
        %356 = vmatpush.msra.mxu0 0.0
        %357 = vmatpush.msra.mxu0 0.0
        %358 = vmatpush.msra.mxu0 0.0
        %359 = vmatpush.msra.mxu0 0.0
        %360 = vmatpush.msra.mxu0 0.0
        %361 = vmatpush.msra.mxu0 0.0
        %362 = vmatpush.msra.mxu0 0.0
        %363 = vmatpush.msra.mxu0 %v230
        %364 = vmatpush.msra.mxu0 %v229
        %365 = vmatpush.msra.mxu0 %v228
        %366 = vmatpush.msra.mxu0 %v227
        %367 = vmatmul.f32.gmra.mxu0 %v253
        %v368 = vpop.f32.mrf.mxu0
        %v369 = vadd.f32 0.0, %v368
        %370 = vmatmul.f32.gmra.mxu0 %v256
        %v371 = vpop.f32.mrf.mxu0
        %v372 = vadd.f32 0.0, %v371
        %373 = vmatmul.f32.gmra.mxu0 %v259
        %v374 = vpop.f32.mrf.mxu0
        %v375 = vadd.f32 0.0, %v374
        %376 = vmatmul.f32.gmra.mxu0 %v262
        %v377 = vpop.f32.mrf.mxu0
        %v378 = vadd.f32 0.0, %v377
        %379 = vmatmul.f32.gmra.mxu0 %v265
        %v380 = vpop.f32.mrf.mxu0
        %v381 = vadd.f32 0.0, %v380
        %382 = vmatmul.f32.gmra.mxu0 %v268
        %v383 = vpop.f32.mrf.mxu0
        %v384 = vadd.f32 0.0, %v383
        %385 = vmatmul.f32.gmra.mxu0 %v271
        %v386 = vpop.f32.mrf.mxu0
        %v387 = vadd.f32 0.0, %v386
        %388 = vmatmul.f32.gmra.mxu0 %v274
        %v389 = vpop.f32.mrf.mxu0
        %v390 = vadd.f32 0.0, %v389
        %391 = vmatmul.f32.gmra.mxu0 %v277
        %v392 = vpop.f32.mrf.mxu0
        %v393 = vadd.f32 0.0, %v392
        %394 = vmatmul.f32.gmra.mxu0 %v280
        %v395 = vpop.f32.mrf.mxu0
        %v396 = vadd.f32 0.0, %v395
        %397 = vmatmul.f32.gmra.mxu0 %v283
        %v398 = vpop.f32.mrf.mxu0
        %v399 = vadd.f32 0.0, %v398
        %400 = vmatmul.f32.gmra.mxu0 %v286
        %v401 = vpop.f32.mrf.mxu0
        %v402 = vadd.f32 0.0, %v401
        %403 = vmatmul.f32.gmra.mxu0 %v289
        %v404 = vpop.f32.mrf.mxu0
        %v405 = vadd.f32 0.0, %v404
        %406 = vmatmul.f32.gmra.mxu0 %v292
        %v407 = vpop.f32.mrf.mxu0
        %v408 = vadd.f32 0.0, %v407
        %409 = vmatmul.f32.gmra.mxu0 %v295
        %v410 = vpop.f32.mrf.mxu0
        %v411 = vadd.f32 0.0, %v410
        %412 = vmatmul.f32.gmra.mxu0 %v298
        %v413 = vpop.f32.mrf.mxu0
        %v414 = vadd.f32 0.0, %v413
        %415 = vdwg.mxu0
        %vm416 = vcmask 64512
        %v418 = vsel %vm416, %v318, 0
        %v421 = vsel %vm416, %v321, 0
        %v424 = vsel %vm416, %v369, 0
        %v427 = vsel %vm416, %v372, 0
        %v430 = vsel %vm416, %v375, 0
        %v433 = vsel %vm416, %v378, 0
        %v436 = vsel %vm416, %v381, 0
        %v439 = vsel %vm416, %v384, 0
        %v442 = vsel %vm416, %v387, 0
        %v445 = vsel %vm416, %v390, 0
        %v448 = vsel %vm416, %v393, 0
        %v451 = vsel %vm416, %v396, 0
        %v454 = vsel %vm416, %v399, 0
        %v457 = vsel %vm416, %v402, 0
        %v460 = vsel %vm416, %v405, 0
        %v463 = vsel %vm416, %v408, 0
        %v466 = vsel %vm416, %v411, 0
        %v469 = vsel %vm416, %v414, 0
        %471 = vmatpush.xpose.msra.mxu0 %v469
        %472 = vmatpush.xpose.msra.mxu0 %v466
        %473 = vmatpush.xpose.msra.mxu0 %v463
        %474 = vmatpush.xpose.msra.mxu0 %v460
        %475 = vmatpush.xpose.msra.mxu0 %v457
        %476 = vmatpush.xpose.msra.mxu0 %v454
        %477 = vmatpush.xpose.msra.mxu0 %v451
        %478 = vmatpush.xpose.msra.mxu0 %v448
        %479 = vmatpush.xpose.msra.mxu0 %v445
        %480 = vmatpush.xpose.msra.mxu0 %v442
        %481 = vmatpush.xpose.msra.mxu0 %v439
        %482 = vmatpush.xpose.msra.mxu0 %v436
        %483 = vmatpush.xpose.msra.mxu0 %v433
        %484 = vmatpush.xpose.msra.mxu0 %v430
        %485 = vmatpush.xpose.msra.mxu0 %v427
        %486 = vmatpush.xpose.msra.mxu0 %v424
        %487 = vmatmul.f32.gmra.mxu0 %v418
        %v488 = vpop.f32.mrf.mxu0
        %v489 = vadd.f32 %v231, %v488
        %490 = vmatmul.f32.gmra.mxu0 %v421
        %v491 = vpop.f32.mrf.mxu0
        %v492 = vadd.f32 %v232, %v491
        %493 = vdwg.mxu0
        %v494 = vmul.f32 %v489, 0.5
        %v495 = vmul.f32 %v492, 0.5
        %v496 = vtanh.pop %v494
        %v497 = vtanh.pop %v495
        %v498 = vadd.f32 %v496, 1.0
        %v499 = vadd.f32 %v497, 1.0
        %v500 = vmul.f32 %v498, 0.5
        %v501 = vmul.f32 %v499, 0.5
        %vm502 = vcmask 130048
        %v504 = vsel %vm502, %v233, 0
        %v507 = vsel %vm502, %v234, 0
        %509 = vmatpush.msra.mxu0 0.0
        %510 = vmatpush.msra.mxu0 0.0
        %511 = vmatpush.msra.mxu0 0.0
        %512 = vmatpush.msra.mxu0 0.0
        %513 = vmatpush.msra.mxu0 0.0
        %514 = vmatpush.msra.mxu0 0.0
        %515 = vmatpush.msra.mxu0 0.0
        %516 = vmatpush.msra.mxu0 0.0
        %517 = vmatpush.msra.mxu0 0.0
        %518 = vmatpush.msra.mxu0 0.0
        %519 = vmatpush.msra.mxu0 0.0
        %520 = vmatpush.msra.mxu0 0.0
        %521 = vmatpush.msra.mxu0 0.0
        %522 = vmatpush.msra.mxu0 0.0
        %523 = vmatpush.msra.mxu0 %v501
        %524 = vmatpush.msra.mxu0 %v500
        %525 = vmatmul.f32.gmra.mxu0 %v504
        %v526 = vpop.f32.mrf.mxu0
        %v527 = vadd.f32 0.0, %v526
        %528 = vmatmul.f32.gmra.mxu0 %v507
        %v529 = vpop.f32.mrf.mxu0
        %v530 = vadd.f32 0.0, %v529
        %531 = vdwg.mxu0
        %v532 = vmax.f32 %v527, %v530
        %v533 = vrot.slane %v532, 4
        %v534 = vmax.f32 %v532, %v533
        %v535 = vrot.slane %v534, 2
        %v536 = vmax.f32 %v534, %v535
        %v537 = vrot.slane %v536, 1
        %v538 = vmax.f32 %v536, %v537
        %v539 = vsub.f32 %v527, %v538
        %v540 = vsub.f32 %v530, %v538
        %v541 = vmul.f32 %v539, 1.442695
        %v542 = vpow.pop %v541
        %v543 = vmul.f32 %v540, 1.442695
        %v544 = vpow.pop %v543
        %v545 = vadd.f32 %v542, %v544
        %v546 = vrot.slane %v545, 4
        %v547 = vadd.f32 %v545, %v546
        %v548 = vrot.slane %v547, 2
        %v549 = vadd.f32 %v547, %v548
        %v550 = vrot.slane %v549, 1
        %v551 = vadd.f32 %v549, %v550
        %v552 = vrcp.pop %v551
        %v553 = vmul.f32 %v542, %v552
        %v554 = vmul.f32 %v544, %v552
        %555 = vst [vmem:[%s217] sm:$0xff] %v553
        %556 = vst [vmem:[%s217 + $0x8] sm:$0xff] %v554
        %s557 = sand.u32 %s137, 1
        %s558 = scalar_lea.sflag [#allocation3], %s557
        %s559 = sand.u32 %s137, 1
        %s560 = smul.addr %s559, 16
        %s561 = scalar_lea.vmem [#allocation2], %s560
        // Predicated region
        $region41: #{spatial_attention.1} parent=39 // pred_check
          %p562 = pneg %p147
        $region42: #{spatial_attention.1} parent=39 // pred_check_branch
          %564 = sbr.rel (%p562) target = $region44
        $region43: #{spatial_attention.1} parent=39 // pred_region
          %566 = vsyncadd %s558, 0
          %s567 = smul.addr %s19, 2
          %s568 = smul.addr %s567, 8
          %s569 = scalar_lea.hbm %s5, %s568
          %s570 = sshll.u32 %s561, 4
          %s571 = int_to_ptr.vmem [resolvable:$true] %s570
          %s572 = sshll.u32 %s569, 4
          %s573 = int_to_ptr.hbm [resolvable:$true] %s572
          %578 = dma.vmem_to_hbm [thread:$0]  %s571, 256, %s573, %s558, 128, 128, 8
        $region44: #{spatial_attention.1} parent=39 // pred_fallthru
          _
      $region40: #{spatial_attention.1} parent=5 // pred_fallthru
        _
      %p579 = scmp.le.s32.totalorder 2, %s14
      // Predicated region
      $region45: #{spatial_attention.1} parent=5 // pred_check
        %p580 = pneg %p579
      $region46: #{spatial_attention.1} parent=5 // pred_check_branch
        %582 = sbr.rel (%p580) target = $region48
      $region47: #{spatial_attention.1} parent=5 // pred_region
        %s583 = ssub.s32 %s14, 2
        // Predicated region
        $region49: #{spatial_attention.1} parent=47 // pred_check
          %p584 = pneg %p153
        $region50: #{spatial_attention.1} parent=47 // pred_check_branch
          %586 = sbr.rel (%p584) target = $region52
        $region51: #{spatial_attention.1} parent=47 // pred_region
          %s587 = sand.u32 %s138, 1
          %s588 = scalar_lea.sflag [#allocation3], %s587
          %s589 = sand.u32 %s138, 1
          %s590 = smul.addr %s589, 16
          %s591 = scalar_lea.vmem [#allocation2], %s590
          %593 = dma.done %s588, 256
        $region52: #{spatial_attention.1} parent=47 // pred_fallthru
          _
      $region48: #{spatial_attention.1} parent=5 // pred_fallthru
        _
    $region6: #{spatial_attention.1} parent=1 // loop_footer
      %s18 = sadd.s32 1, %s14
    $region7: #{spatial_attention.1} parent=1 // loop_footer_branch
      %13 = sbr.rel target = $region3
    $region8: #{spatial_attention.1} parent=1 // loop_exit
      _
    %594 = vsyncpa [#allocation3], 1
    %s595 = scalar_lea.sflag [#allocation3], 1
    %596 = vsyncpa %s595, 1

</llo_original>
